<compile_context>
chip_gen: v7x
topology: tpu7x:2x2x1
jax: 0.10.0
libtpu: 0.0.40
codegen_flags: <defaults>
</compile_context>

<pallas_src>
import functools

import jax
import jax.numpy as jnp
from jax.experimental import pallas as pl
from jax.experimental.pallas import tpu as pltpu


def _round_up(v, m):
    return (v + m - 1) // m * m


def _cnn_kernel(feat_ref, slab_ref, out_ref, *, ne, k, nblk, nno,
                off_bias, off_g, off_bft):
    # feat_ref : (B, N*E)     image features, spatial index folded onto lanes
    # slab_ref : (rows, LW)   packed constants (single DMA):
    #              rows [0:ne)             fused linear+cross+conv weights  (N*E, 2*N*N*Cout)
    #              row  off_bias           fused conv bias row (border-aware, incl. b1 & bc)
    #              rows [off_g:off_g+k)    fused cross+final-linear weights (N*Cout, N*N*O)
    #              row  off_bft            final bias tiled over all (i, j)
    # out_ref  : (B, N*N*O)   lane-dense flattened output
    f32 = jnp.float32

    # One matmul -> full pre-relu conv tensor per image, lane-dense, in both (i,j,c) and
    # (j,i,c) lane orders (first / second half of the lanes).
    conv = (jnp.dot(feat_ref[...], slab_ref[0:ne, :], preferred_element_type=f32)
            + slab_ref[off_bias:off_bias + 1, :])                     # (B, LW)

    # mp[b,s,c] = max(max_i conv[b,i,s,c], max_j conv[b,s,j,c]).  Every k-lane block of `conv`
    # holds one spatial slice with matching (s, c) lane positions, so the pooled value is just
    # the max over the 2N blocks.  relu commutes with max -> applied once at the end.
    width = nblk * k
    m = conv[:, :width]
    if (nblk & (nblk - 1)) == 0:          # power-of-two: vreg-friendly lane-halving tree
        while width > k:
            width //= 2
            m = jnp.maximum(m[:, :width], m[:, width:2 * width])
    else:                                 # general fallback: pairwise block tree
        blocks = [m[:, t * k:(t + 1) * k] for t in range(nblk)]
        while len(blocks) > 1:
            nxt = [jnp.maximum(blocks[i], blocks[i + 1])
                   for i in range(0, len(blocks) - 1, 2)]
            if len(blocks) & 1:
                nxt.append(blocks[-1])
            blocks = nxt
        m = blocks[0]
    mp = jnp.maximum(m, 0.0)                                          # (B, N*Cout)

    # Batched final cross + linear: one matmul + one lane-dense store for the whole batch.
    out_ref[...] = (jnp.dot(mp, slab_ref[off_g:off_g + k, 0:nno],
                            preferred_element_type=f32)
                    + slab_ref[off_bft:off_bft + 1, 0:nno])


@jax.jit
def cnn_forward(feature, w1, b1, wc_hwio, bc, wf, bf):
    """feature: (B, N, E) float32. Returns (B, N, N, O) float32."""
    B, N, E = feature.shape
    H = w1.shape[1]
    Cout = wc_hwio.shape[3]
    O = wf.shape[1]
    f32 = jnp.float32

    feat_folded = feature.reshape(B, N * E)          # free view; spatial onto lanes

    # ---- Fold linear -> cross -> conv (with zero padding & both biases) into one matrix.
    # conv[b,i,j,c] = sum_{x,y in 0..2} 1{0<=i+x-1<N} 1{0<=j+y-1<N}
    #                  ( lin[b,i+x-1] . WL[x,y,:,c] + lin[b,j+y-1] . WR[x,y,:,c] ) + bc[c]
    # with lin = feature @ w1 + b1; WL / WR act on the row / column half of the cross feature.
    WL = wc_hwio[:, :, :H, :]                        # (3, 3, H, Cout)
    WR = wc_hwio[:, :, H:, :]
    GL = jnp.einsum('eh,xyhc->xyec', w1, WL)         # conv weights pulled back through w1
    GR = jnp.einsum('eh,xyhc->xyec', w1, WR)
    bL = jnp.einsum('h,xyhc->xyc', b1, WL)           # b1's (border-aware) contribution
    bR = jnp.einsum('h,xyhc->xyc', b1, WR)
    # D[x, n, i] = 1 iff source row n == i + x - 1 is an in-bounds tap; V[x, i] = tap validity.
    D = jnp.stack([jnp.eye(N, k=1 - x, dtype=f32) for x in range(3)])     # (3, N, N)
    V = jnp.sum(D, axis=1)                                                # (3, N)
    W_P = jnp.einsum('xni,yj,xyec->neijc', D, V, GL)   # row-feature term
    W_Q = jnp.einsum('xi,ynj,xyec->neijc', V, D, GR)   # column-feature term
    Wfull = W_P + W_Q                                   # (N, E, N, N, Cout)
    bias_t = jnp.einsum('xi,yj,xyc->ijc', V, V, bL + bR) + bc             # (N, N, Cout)

    K = N * Cout
    CW = N * N * Cout
    # Both lane orders so both maxpool directions reduce over contiguous K-lane blocks.
    W_ij = Wfull.reshape(N * E, CW)
    W_ji = jnp.transpose(Wfull, (0, 1, 3, 2, 4)).reshape(N * E, CW)
    Wcat = jnp.concatenate([W_ij, W_ji], axis=1)                          # (N*E, 2*CW)
    bias_cat = jnp.concatenate(
        [bias_t.reshape(-1), jnp.transpose(bias_t, (1, 0, 2)).reshape(-1)])

    # ---- Fold maxpool-cross -> final linear into one (N*Cout, N*N*O) matrix.
    wft, wfb = wf[:Cout], wf[Cout:]
    eyeN = jnp.eye(N, dtype=f32)
    g5 = (eyeN[:, None, :, None, None] * wft[None, :, None, None, :]
          + eyeN[:, None, None, :, None] * wfb[None, :, None, None, :])   # (s, c, i, j, o)
    G = g5.reshape(K, N * N * O)
    bft = jnp.tile(bf.reshape(1, O), (1, N * N)).reshape(-1)              # (N*N*O,)

    # ---- Pack every constant into ONE lane-padded slab => a single constant DMA.
    NE = N * E
    NNO = N * N * O
    LW = _round_up(max(2 * CW, NNO), 128)
    off_bias = _round_up(NE, 8)
    off_g = off_bias + 8
    off_bft = off_g + _round_up(K, 8)
    rows = off_bft + 8
    slab = jnp.zeros((rows, LW), f32)
    slab = slab.at[:NE, :2 * CW].set(Wcat)
    slab = slab.at[off_bias, :2 * CW].set(bias_cat)
    slab = slab.at[off_g:off_g + K, :NNO].set(G)
    slab = slab.at[off_bft, :NNO].set(bft)

    grid_spec = pltpu.PrefetchScalarGridSpec(
        num_scalar_prefetch=0,
        grid=(1,),                        # everything resident in one step (B is tiny);
        in_specs=[                        # if B grows: grid=(B,) + "parallel" (2nd TC on v7x).
            pl.BlockSpec((B, NE), lambda i: (0, 0)),
            pl.BlockSpec((rows, LW), lambda i: (0, 0)),
        ],
        out_specs=pl.BlockSpec((B, NNO), lambda i: (0, 0)),
    )
    out_flat = pl.pallas_call(
        functools.partial(_cnn_kernel, ne=NE, k=K, nblk=2 * N, nno=NNO,
                          off_bias=off_bias, off_g=off_g, off_bft=off_bft),
        out_shape=jax.ShapeDtypeStruct((B, NNO), jnp.float32),
        grid_spec=grid_spec,
        compiler_params=pltpu.CompilerParams(dimension_semantics=("arbitrary",)),
    )(feat_folded, slab)
    return out_flat.reshape(B, N, N, O)


def reference(feature, w1, b1, wc_hwio, bc, wf, bf):
    """Pure-JAX reference reproducing the PyTorch forward (feature_crossed=False)."""
    B, N, E = feature.shape
    H = w1.shape[1]
    Cout = wc_hwio.shape[3]
    lin = feature @ w1 + b1                                            # (B, N, H)
    left = jnp.broadcast_to(lin[:, :, None, :], (B, N, N, H))
    right = jnp.broadcast_to(lin[:, None, :, :], (B, N, N, H))
    cross = jnp.concatenate([left, right], axis=-1)                    # (B, N, N, C)
    conv = jax.lax.conv_general_dilated(
        cross, wc_hwio, window_strides=(1, 1), padding="SAME",
        dimension_numbers=("NHWC", "HWIO", "NHWC"))
    conv = jnp.maximum(conv + bc, 0.0)                                 # (B, N, N, Cout)
    mp = jnp.maximum(jnp.max(conv, axis=1), jnp.max(conv, axis=2))     # (B, N, Cout)
    c2 = jnp.concatenate(
        [jnp.broadcast_to(mp[:, :, None, :], (B, N, N, Cout)),
         jnp.broadcast_to(mp[:, None, :, :], (B, N, N, Cout))], axis=-1)
    return c2 @ wf + bf


if __name__ == "__main__":
    key = jax.random.PRNGKey(0)
    B, N = 2, 8
    emb_size = 32
    conv_in = emb_size // 4       # 8
    conv_out = emb_size // 8      # 4
    out_size = emb_size // 8      # 4
    H = conv_in // 2              # 4 (feature_crossed=False branch)

    ks = jax.random.split(key, 7)
    feature = jax.random.normal(ks[0], (B, N, emb_size), jnp.float32)
    w1 = jax.random.normal(ks[1], (emb_size, H), jnp.float32) * 0.1
    b1 = jax.random.normal(ks[2], (H,), jnp.float32) * 0.1
    wc = jax.random.normal(ks[3], (3, 3, conv_in, conv_out), jnp.float32) * 0.1
    bc = jax.random.normal(ks[4], (conv_out,), jnp.float32) * 0.1
    wf = jax.random.normal(ks[5], (2 * conv_out, out_size), jnp.float32) * 0.1
    bf = jax.random.normal(ks[6], (out_size,), jnp.float32) * 0.1

    out = jax.block_until_ready(cnn_forward(feature, w1, b1, wc, bc, wf, bf))

    ref = reference(feature, w1, b1, wc, bc, wf, bf)
    assert out.shape == (B, N, N, out_size), out.shape
    assert jnp.allclose(out, ref, rtol=5e-3, atol=5e-3), float(
        jnp.max(jnp.abs(out - ref)))
    print("KERNEL_OK")
</pallas_src>

<mosaic_0001>
module attributes {stable_mosaic.version = 11 : i64} {
  func.func @_cnn_kernel(%arg0: i32, %arg1: memref<2x256xf32, #tpu.memory_space<vmem>>, %arg2: memref<304x512xf32, #tpu.memory_space<vmem>>, %arg3: memref<2x256xf32, #tpu.memory_space<vmem>>) attributes {dimension_semantics = [#tpu.dimension_semantics<arbitrary>], iteration_bounds = array<i64: 1>, scalar_prefetch = 0 : i64, scratch_operands = 0 : i64, tpu.core_type = #tpu.core_type<tc>, window_params = [{pipeline_mode = #tpu.pipeline_mode<synchronous>, transform_indices = @transform_0, window_bounds = array<i64: 2, 256>}, {pipeline_mode = #tpu.pipeline_mode<synchronous>, transform_indices = @transform_1, window_bounds = array<i64: 304, 512>}, {pipeline_mode = #tpu.pipeline_mode<synchronous>, transform_indices = @transform_2, window_bounds = array<i64: 2, 256>}]} {
    %c0 = arith.constant 0 : index
    %c0_0 = arith.constant 0 : index
    %0 = vector.load %arg1[%c0, %c0_0] : memref<2x256xf32, #tpu.memory_space<vmem>>, vector<2x256xf32>
    %c0_1 = arith.constant 0 : index
    %c0_2 = arith.constant 0 : index
    %1 = vector.load %arg2[%c0_1, %c0_2] : memref<304x512xf32, #tpu.memory_space<vmem>>, vector<256x512xf32>
    %cst = arith.constant dense<0.000000e+00> : vector<2x512xf32>
    %2 = tpu.matmul %0, %1, %cst {dimension_numbers = #tpu.dot_dimension_numbers<[1], [0], [0], [1], [0, 0, 1, 1], [], []>} : vector<2x256xf32>, vector<256x512xf32>, vector<2x512xf32> -> vector<2x512xf32>
    %c256 = arith.constant 256 : index
    %c0_3 = arith.constant 0 : index
    %3 = vector.load %arg2[%c256, %c0_3] : memref<304x512xf32, #tpu.memory_space<vmem>>, vector<1x512xf32>
    %4 = vector.broadcast %3 : vector<1x512xf32> to vector<2x512xf32>
    %5 = arith.addf %2, %4 : vector<2x512xf32>
    %6 = vector.extract_strided_slice %5 {offsets = [0, 0], sizes = [2, 256], strides = [1, 1]} : vector<2x512xf32> to vector<2x256xf32>
    %7 = vector.extract_strided_slice %5 {offsets = [0, 256], sizes = [2, 256], strides = [1, 1]} : vector<2x512xf32> to vector<2x256xf32>
    %8 = arith.maximumf %6, %7 : vector<2x256xf32>
    %9 = vector.extract_strided_slice %8 {offsets = [0, 0], sizes = [2, 128], strides = [1, 1]} : vector<2x256xf32> to vector<2x128xf32>
    %10 = vector.extract_strided_slice %8 {offsets = [0, 128], sizes = [2, 128], strides = [1, 1]} : vector<2x256xf32> to vector<2x128xf32>
    %11 = arith.maximumf %9, %10 : vector<2x128xf32>
    %12 = vector.extract_strided_slice %11 {offsets = [0, 0], sizes = [2, 64], strides = [1, 1]} : vector<2x128xf32> to vector<2x64xf32>
    %13 = vector.extract_strided_slice %11 {offsets = [0, 64], sizes = [2, 64], strides = [1, 1]} : vector<2x128xf32> to vector<2x64xf32>
    %14 = arith.maximumf %12, %13 : vector<2x64xf32>
    %15 = vector.extract_strided_slice %14 {offsets = [0, 0], sizes = [2, 32], strides = [1, 1]} : vector<2x64xf32> to vector<2x32xf32>
    %16 = vector.extract_strided_slice %14 {offsets = [0, 32], sizes = [2, 32], strides = [1, 1]} : vector<2x64xf32> to vector<2x32xf32>
    %17 = arith.maximumf %15, %16 : vector<2x32xf32>
    %cst_4 = arith.constant 0.000000e+00 : f32
    %18 = vector.broadcast %cst_4 : f32 to vector<2x32xf32>
    %19 = arith.maximumf %17, %18 : vector<2x32xf32>
    %c264 = arith.constant 264 : index
    %c0_5 = arith.constant 0 : index
    %20 = vector.load %arg2[%c264, %c0_5] : memref<304x512xf32, #tpu.memory_space<vmem>>, vector<32x256xf32>
    %cst_6 = arith.constant dense<0.000000e+00> : vector<2x256xf32>
    %21 = tpu.matmul %19, %20, %cst_6 {dimension_numbers = #tpu.dot_dimension_numbers<[1], [0], [0], [1], [0, 0, 1, 1], [], []>} : vector<2x32xf32>, vector<32x256xf32>, vector<2x256xf32> -> vector<2x256xf32>
    %c296 = arith.constant 296 : index
    %c0_7 = arith.constant 0 : index
    %22 = vector.load %arg2[%c296, %c0_7] : memref<304x512xf32, #tpu.memory_space<vmem>>, vector<1x256xf32>
    %23 = vector.broadcast %22 : vector<1x256xf32> to vector<2x256xf32>
    %24 = arith.addf %21, %23 : vector<2x256xf32>
    %c0_8 = arith.constant 0 : index
    %c0_9 = arith.constant 0 : index
    %25 = vector.load %arg3[%c0_8, %c0_9] : memref<2x256xf32, #tpu.memory_space<vmem>>, vector<2x256xf32>
    tpu.vector_store %arg3[%c0_8, %c0_9], %24 {strides = array<i32>} : memref<2x256xf32, #tpu.memory_space<vmem>>, vector<2x256xf32>,
    return
  }
  func.func @transform_0(%arg0: i32) -> (i32, i32) {
    %c0_i32 = arith.constant 0 : i32
    %c0_i32_0 = arith.constant 0 : i32
    %c0_i32_1 = arith.constant 0 : i32
    return %c0_i32, %c0_i32_0 : i32, i32
  }
  func.func @transform_1(%arg0: i32) -> (i32, i32) {
    %c0_i32 = arith.constant 0 : i32
    %c0_i32_0 = arith.constant 0 : i32
    %c0_i32_1 = arith.constant 0 : i32
    return %c0_i32, %c0_i32_0 : i32, i32
  }
  func.func @transform_2(%arg0: i32) -> (i32, i32) {
    %c0_i32 = arith.constant 0 : i32
    %c0_i32_0 = arith.constant 0 : i32
    %c0_i32_1 = arith.constant 0 : i32
    return %c0_i32, %c0_i32_0 : i32, i32
  }
}

</mosaic_0001>

<llo_original>
// kernel: cnn_forward.1
$region0: #{cnn_forward.1}
  #allocation0 [shape = 'u32[]', space=smem, size = 0x4, offset = 0x4, fixed_abs, tag = 'smem constant byte address 0x4 - core index']
  #allocation1 [shape = 'u32[144,128]{1,0:T(1,128)}', space=vmem, size = 0x12000, scoped, tag = 'internal scratch']
  %s0 = inlined_call_operand.vmem [shape: f32[2,256], index: 0, kind: input, shape index: {}]
  %s1 = inlined_call_operand.vmem [shape: f32[304,512], index: 1, kind: input, shape index: {}]
  %s2 = inlined_call_operand.vmem [shape: f32[2,256], index: 2, kind: output, shape index: {}]
  %s3 = sld [smem:[#allocation0]]
  $region18: #{cnn_forward.1} parent=0
    _
  %s5 = ssub.s32 1, %s3
  %s6 = scalar_select 0, %s5, %s3
  // Predicated region
  $region2: #{cnn_forward.1} parent=0 // pred_check
    _
  $region3: #{cnn_forward.1} parent=0 // pred_check_branch
    %8 = sbr.rel (0) target = $region5
  $region4: #{cnn_forward.1} parent=0 // pred_region
    _
  $region5: #{cnn_forward.1} parent=0 // pred_fallthru
    _
  // Predicated region
  $region6: #{cnn_forward.1} parent=0 // pred_check
    _
  $region7: #{cnn_forward.1} parent=0 // pred_check_branch
    %10 = sbr.rel (0) target = $region9
  $region8: #{cnn_forward.1} parent=0 // pred_region
    _
  $region9: #{cnn_forward.1} parent=0 // pred_fallthru
    _
  %v11 = vld [vmem:[%s0] sm:$0xf]
  %v12 = vld [vmem:[%s1] sm:$0xff]
  %v13 = vld [vmem:[%s1 + $0x8] sm:$0xff]
  %v14 = vld [vmem:[%s1 + $0x10] sm:$0xff]
  %v15 = vld [vmem:[%s1 + $0x18] sm:$0xff]
  %v16 = vld [vmem:[%s1 + $0x20] sm:$0xff]
  %v17 = vld [vmem:[%s1 + $0x28] sm:$0xff]
  %v18 = vld [vmem:[%s1 + $0x30] sm:$0xff]
  %v19 = vld [vmem:[%s1 + $0x38] sm:$0xff]
  %v20 = vld [vmem:[%s1 + $0x40] sm:$0xff]
  %v21 = vld [vmem:[%s1 + $0x48] sm:$0xff]
  %v22 = vld [vmem:[%s1 + $0x50] sm:$0xff]
  %v23 = vld [vmem:[%s1 + $0x58] sm:$0xff]
  %v24 = vld [vmem:[%s1 + $0x60] sm:$0xff]
  %v25 = vld [vmem:[%s1 + $0x68] sm:$0xff]
  %v26 = vld [vmem:[%s1 + $0x70] sm:$0xff]
  %v27 = vld [vmem:[%s1 + $0x78] sm:$0xff]
  %v28 = vld [vmem:[%s1 + $0x80] sm:$0xff]
  %v29 = vld [vmem:[%s1 + $0x88] sm:$0xff]
  %v30 = vld [vmem:[%s1 + $0x90] sm:$0xff]
  %v31 = vld [vmem:[%s1 + $0x98] sm:$0xff]
  %v32 = vld [vmem:[%s1 + $0xa0] sm:$0xff]
  %v33 = vld [vmem:[%s1 + $0xa8] sm:$0xff]
  %v34 = vld [vmem:[%s1 + $0xb0] sm:$0xff]
  %v35 = vld [vmem:[%s1 + $0xb8] sm:$0xff]
  %v36 = vld [vmem:[%s1 + $0xc0] sm:$0xff]
  %v37 = vld [vmem:[%s1 + $0xc8] sm:$0xff]
  %v38 = vld [vmem:[%s1 + $0xd0] sm:$0xff]
  %v39 = vld [vmem:[%s1 + $0xd8] sm:$0xff]
  %v40 = vld [vmem:[%s1 + $0xe0] sm:$0xff]
  %v41 = vld [vmem:[%s1 + $0xe8] sm:$0xff]
  %v42 = vld [vmem:[%s1 + $0xf0] sm:$0xff]
  %v43 = vld [vmem:[%s1 + $0xf8] sm:$0xff]
  %v44 = vld [vmem:[%s1 + $0x100] sm:$0xff]
  %v45 = vld [vmem:[%s1 + $0x108] sm:$0xff]
  %v46 = vld [vmem:[%s1 + $0x110] sm:$0xff]
  %v47 = vld [vmem:[%s1 + $0x118] sm:$0xff]
  %v48 = vld [vmem:[%s1 + $0x120] sm:$0xff]
  %v49 = vld [vmem:[%s1 + $0x128] sm:$0xff]
  %v50 = vld [vmem:[%s1 + $0x130] sm:$0xff]
  %v51 = vld [vmem:[%s1 + $0x138] sm:$0xff]
  %v52 = vld [vmem:[%s1 + $0x140] sm:$0xff]
  %v53 = vld [vmem:[%s1 + $0x148] sm:$0xff]
  %v54 = vld [vmem:[%s1 + $0x150] sm:$0xff]
  %v55 = vld [vmem:[%s1 + $0x158] sm:$0xff]
  %v56 = vld [vmem:[%s1 + $0x160] sm:$0xff]
  %v57 = vld [vmem:[%s1 + $0x168] sm:$0xff]
  %v58 = vld [vmem:[%s1 + $0x170] sm:$0xff]
  %v59 = vld [vmem:[%s1 + $0x178] sm:$0xff]
  %v60 = vld [vmem:[%s1 + $0x180] sm:$0xff]
  %v61 = vld [vmem:[%s1 + $0x188] sm:$0xff]
  %v62 = vld [vmem:[%s1 + $0x190] sm:$0xff]
  %v63 = vld [vmem:[%s1 + $0x198] sm:$0xff]
  %v64 = vld [vmem:[%s1 + $0x1a0] sm:$0xff]
  %v65 = vld [vmem:[%s1 + $0x1a8] sm:$0xff]
  %v66 = vld [vmem:[%s1 + $0x1b0] sm:$0xff]
  %v67 = vld [vmem:[%s1 + $0x1b8] sm:$0xff]
  %v68 = vld [vmem:[%s1 + $0x1c0] sm:$0xff]
  %v69 = vld [vmem:[%s1 + $0x1c8] sm:$0xff]
  %v70 = vld [vmem:[%s1 + $0x1d0] sm:$0xff]
  %v71 = vld [vmem:[%s1 + $0x1d8] sm:$0xff]
  %v72 = vld [vmem:[%s1 + $0x1e0] sm:$0xff]
  %v73 = vld [vmem:[%s1 + $0x1e8] sm:$0xff]
  %v74 = vld [vmem:[%s1 + $0x1f0] sm:$0xff]
  %v75 = vld [vmem:[%s1 + $0x1f8] sm:$0xff]
  %v76 = vld [vmem:[%s1 + $0x200] sm:$0xff]
  %v77 = vld [vmem:[%s1 + $0x208] sm:$0xff]
  %v78 = vld [vmem:[%s1 + $0x210] sm:$0xff]
  %v79 = vld [vmem:[%s1 + $0x218] sm:$0xff]
  %v80 = vld [vmem:[%s1 + $0x220] sm:$0xff]
  %v81 = vld [vmem:[%s1 + $0x228] sm:$0xff]
  %v82 = vld [vmem:[%s1 + $0x230] sm:$0xff]
  %v83 = vld [vmem:[%s1 + $0x238] sm:$0xff]
  %v84 = vld [vmem:[%s1 + $0x240] sm:$0xff]
  %v85 = vld [vmem:[%s1 + $0x248] sm:$0xff]
  %v86 = vld [vmem:[%s1 + $0x250] sm:$0xff]
  %v87 = vld [vmem:[%s1 + $0x258] sm:$0xff]
  %v88 = vld [vmem:[%s1 + $0x260] sm:$0xff]
  %v89 = vld [vmem:[%s1 + $0x268] sm:$0xff]
  %v90 = vld [vmem:[%s1 + $0x270] sm:$0xff]
  %v91 = vld [vmem:[%s1 + $0x278] sm:$0xff]
  %v92 = vld [vmem:[%s1 + $0x280] sm:$0xff]
  %v93 = vld [vmem:[%s1 + $0x288] sm:$0xff]
  %v94 = vld [vmem:[%s1 + $0x290] sm:$0xff]
  %v95 = vld [vmem:[%s1 + $0x298] sm:$0xff]
  %v96 = vld [vmem:[%s1 + $0x2a0] sm:$0xff]
  %v97 = vld [vmem:[%s1 + $0x2a8] sm:$0xff]
  %v98 = vld [vmem:[%s1 + $0x2b0] sm:$0xff]
  %v99 = vld [vmem:[%s1 + $0x2b8] sm:$0xff]
  %v100 = vld [vmem:[%s1 + $0x2c0] sm:$0xff]
  %v101 = vld [vmem:[%s1 + $0x2c8] sm:$0xff]
  %v102 = vld [vmem:[%s1 + $0x2d0] sm:$0xff]
  %v103 = vld [vmem:[%s1 + $0x2d8] sm:$0xff]
  %v104 = vld [vmem:[%s1 + $0x2e0] sm:$0xff]
  %v105 = vld [vmem:[%s1 + $0x2e8] sm:$0xff]
  %v106 = vld [vmem:[%s1 + $0x2f0] sm:$0xff]
  %v107 = vld [vmem:[%s1 + $0x2f8] sm:$0xff]
  %v108 = vld [vmem:[%s1 + $0x300] sm:$0xff]
  %v109 = vld [vmem:[%s1 + $0x308] sm:$0xff]
  %v110 = vld [vmem:[%s1 + $0x310] sm:$0xff]
  %v111 = vld [vmem:[%s1 + $0x318] sm:$0xff]
  %v112 = vld [vmem:[%s1 + $0x320] sm:$0xff]
  %v113 = vld [vmem:[%s1 + $0x328] sm:$0xff]
  %v114 = vld [vmem:[%s1 + $0x330] sm:$0xff]
  %v115 = vld [vmem:[%s1 + $0x338] sm:$0xff]
  %v116 = vld [vmem:[%s1 + $0x340] sm:$0xff]
  %v117 = vld [vmem:[%s1 + $0x348] sm:$0xff]
  %v118 = vld [vmem:[%s1 + $0x350] sm:$0xff]
  %v119 = vld [vmem:[%s1 + $0x358] sm:$0xff]
  %v120 = vld [vmem:[%s1 + $0x360] sm:$0xff]
  %v121 = vld [vmem:[%s1 + $0x368] sm:$0xff]
  %v122 = vld [vmem:[%s1 + $0x370] sm:$0xff]
  %v123 = vld [vmem:[%s1 + $0x378] sm:$0xff]
  %v124 = vld [vmem:[%s1 + $0x380] sm:$0xff]
  %v125 = vld [vmem:[%s1 + $0x388] sm:$0xff]
  %v126 = vld [vmem:[%s1 + $0x390] sm:$0xff]
  %v127 = vld [vmem:[%s1 + $0x398] sm:$0xff]
  %v128 = vld [vmem:[%s1 + $0x3a0] sm:$0xff]
  %v129 = vld [vmem:[%s1 + $0x3a8] sm:$0xff]
  %v130 = vld [vmem:[%s1 + $0x3b0] sm:$0xff]
  %v131 = vld [vmem:[%s1 + $0x3b8] sm:$0xff]
  %v132 = vld [vmem:[%s1 + $0x3c0] sm:$0xff]
  %v133 = vld [vmem:[%s1 + $0x3c8] sm:$0xff]
  %v134 = vld [vmem:[%s1 + $0x3d0] sm:$0xff]
  %v135 = vld [vmem:[%s1 + $0x3d8] sm:$0xff]
  %v136 = vld [vmem:[%s1 + $0x3e0] sm:$0xff]
  %v137 = vld [vmem:[%s1 + $0x3e8] sm:$0xff]
  %v138 = vld [vmem:[%s1 + $0x3f0] sm:$0xff]
  %v139 = vld [vmem:[%s1 + $0x3f8] sm:$0xff]
  %s140 = scalar_lea.vmem %s1, 1024
  %v141 = vld [vmem:[%s140] ss:$8 sm:$0xf]
  %v143 = vlaneseq
  %v144 = vshrl.u32 %v143, 7
  %v145 = vsub.s32 0, %v144
  %v146 = vrot.slane %v141, %v145
  %v147 = vlaneseq
  %v148 = vshrl.u32 %v147, 7
  %v149 = vsub.s32 1, %v148
  %v150 = vrot.slane %v141, %v149
  %v151 = vlaneseq
  %v152 = vshrl.u32 %v151, 7
  %v153 = vsub.s32 2, %v152
  %v154 = vrot.slane %v141, %v153
  %v155 = vlaneseq
  %v156 = vshrl.u32 %v155, 7
  %v157 = vsub.s32 3, %v156
  %v158 = vrot.slane %v141, %v157
  %v165 = vunpack.c.l.s4 1983009808
  %v166 = vunpack.c.0.s8 %v165
  %v167 = vlaneseq
  %v168 = vshrl.u32 %v167, 7
  %v169 = vsub.s32 %v166, %v168
  %v170 = vrot.slane %v11, %v169
  %v171 = vcombine.high %v170, %v170
  %174 = vmatprep.subr.mxu0 %v13
  %175 = vmatpush1.msra.mxu0 %v12
  %176 = vmatprep.subr.mxu0 %v17
  %177 = vmatpush1.msra.mxu0 %v16
  %178 = vmatprep.subr.mxu0 %v21
  %179 = vmatpush1.msra.mxu0 %v20
  %180 = vmatprep.subr.mxu0 %v25
  %181 = vmatpush1.msra.mxu0 %v24
  %182 = vmatprep.subr.mxu0 %v29
  %183 = vmatpush1.msra.mxu0 %v28
  %184 = vmatprep.subr.mxu0 %v33
  %185 = vmatpush1.msra.mxu0 %v32
  %186 = vmatprep.subr.mxu0 %v37
  %187 = vmatpush1.msra.mxu0 %v36
  %188 = vmatprep.subr.mxu0 %v41
  %189 = vmatpush1.msra.mxu0 %v40
  %190 = vmatprep.subr.mxu0 %v45
  %191 = vmatpush1.msra.mxu0 %v44
  %192 = vmatprep.subr.mxu0 %v49
  %193 = vmatpush1.msra.mxu0 %v48
  %194 = vmatprep.subr.mxu0 %v53
  %195 = vmatpush1.msra.mxu0 %v52
  %196 = vmatprep.subr.mxu0 %v57
  %197 = vmatpush1.msra.mxu0 %v56
  %198 = vmatprep.subr.mxu0 %v61
  %199 = vmatpush1.msra.mxu0 %v60
  %200 = vmatprep.subr.mxu0 %v65
  %201 = vmatpush1.msra.mxu0 %v64
  %202 = vmatprep.subr.mxu0 %v69
  %203 = vmatpush1.msra.mxu0 %v68
  %204 = vmatprep.subr.mxu0 %v73
  %205 = vmatpush1.msra.mxu0 %v72
  %206 = vmatprep.subr.mxu0 %v77
  %207 = vmatpush1.msra.mxu0 %v76
  %208 = vmatprep.subr.mxu0 %v81
  %209 = vmatpush1.msra.mxu0 %v80
  %210 = vmatprep.subr.mxu0 %v85
  %211 = vmatpush1.msra.mxu0 %v84
  %212 = vmatprep.subr.mxu0 %v89
  %213 = vmatpush1.msra.mxu0 %v88
  %214 = vmatprep.subr.mxu0 %v93
  %215 = vmatpush1.msra.mxu0 %v92
  %216 = vmatprep.subr.mxu0 %v97
  %217 = vmatpush1.msra.mxu0 %v96
  %218 = vmatprep.subr.mxu0 %v101
  %219 = vmatpush1.msra.mxu0 %v100
  %220 = vmatprep.subr.mxu0 %v105
  %221 = vmatpush1.msra.mxu0 %v104
  %222 = vmatprep.subr.mxu0 %v109
  %223 = vmatpush1.msra.mxu0 %v108
  %224 = vmatprep.subr.mxu0 %v113
  %225 = vmatpush1.msra.mxu0 %v112
  %226 = vmatprep.subr.mxu0 %v117
  %227 = vmatpush1.msra.mxu0 %v116
  %228 = vmatprep.subr.mxu0 %v121
  %229 = vmatpush1.msra.mxu0 %v120
  %230 = vmatprep.subr.mxu0 %v125
  %231 = vmatpush1.msra.mxu0 %v124
  %232 = vmatprep.subr.mxu0 %v129
  %233 = vmatpush1.msra.mxu0 %v128
  %234 = vmatprep.subr.mxu0 %v133
  %235 = vmatpush1.msra.mxu0 %v132
  %236 = vmatprep.subr.mxu0 %v137
  %237 = vmatpush1.msra.mxu0 %v136
  %238 = vmatprep.mubr.f32.mxu0 %v171
  %239 = vmatmul.mubr.f32.gmra.mrb[0].mxu0 %v170
  %v240 = vpop.f32.mrb[0].mxu0
  %v241 = vadd.f32 %v146, %v240
  %v242 = vpop.f32.mrb[0].mxu0
  %v243 = vadd.f32 %v150, %v242
  %244 = vdwg.mxu0
  %245 = vmatprep.subr.mxu0 %v15
  %246 = vmatpush1.msra.mxu0 %v14
  %247 = vmatprep.subr.mxu0 %v19
  %248 = vmatpush1.msra.mxu0 %v18
  %249 = vmatprep.subr.mxu0 %v23
  %250 = vmatpush1.msra.mxu0 %v22
  %251 = vmatprep.subr.mxu0 %v27
  %252 = vmatpush1.msra.mxu0 %v26
  %253 = vmatprep.subr.mxu0 %v31
  %254 = vmatpush1.msra.mxu0 %v30
  %255 = vmatprep.subr.mxu0 %v35
  %256 = vmatpush1.msra.mxu0 %v34
  %257 = vmatprep.subr.mxu0 %v39
  %258 = vmatpush1.msra.mxu0 %v38
  %259 = vmatprep.subr.mxu0 %v43
  %260 = vmatpush1.msra.mxu0 %v42
  %261 = vmatprep.subr.mxu0 %v47
  %262 = vmatpush1.msra.mxu0 %v46
  %263 = vmatprep.subr.mxu0 %v51
  %264 = vmatpush1.msra.mxu0 %v50
  %265 = vmatprep.subr.mxu0 %v55
  %266 = vmatpush1.msra.mxu0 %v54
  %267 = vmatprep.subr.mxu0 %v59
  %268 = vmatpush1.msra.mxu0 %v58
  %269 = vmatprep.subr.mxu0 %v63
  %270 = vmatpush1.msra.mxu0 %v62
  %271 = vmatprep.subr.mxu0 %v67
  %272 = vmatpush1.msra.mxu0 %v66
  %273 = vmatprep.subr.mxu0 %v71
  %274 = vmatpush1.msra.mxu0 %v70
  %275 = vmatprep.subr.mxu0 %v75
  %276 = vmatpush1.msra.mxu0 %v74
  %277 = vmatprep.subr.mxu0 %v79
  %278 = vmatpush1.msra.mxu0 %v78
  %279 = vmatprep.subr.mxu0 %v83
  %280 = vmatpush1.msra.mxu0 %v82
  %281 = vmatprep.subr.mxu0 %v87
  %282 = vmatpush1.msra.mxu0 %v86
  %283 = vmatprep.subr.mxu0 %v91
  %284 = vmatpush1.msra.mxu0 %v90
  %285 = vmatprep.subr.mxu0 %v95
  %286 = vmatpush1.msra.mxu0 %v94
  %287 = vmatprep.subr.mxu0 %v99
  %288 = vmatpush1.msra.mxu0 %v98
  %289 = vmatprep.subr.mxu0 %v103
  %290 = vmatpush1.msra.mxu0 %v102
  %291 = vmatprep.subr.mxu0 %v107
  %292 = vmatpush1.msra.mxu0 %v106
  %293 = vmatprep.subr.mxu0 %v111
  %294 = vmatpush1.msra.mxu0 %v110
  %295 = vmatprep.subr.mxu0 %v115
  %296 = vmatpush1.msra.mxu0 %v114
  %297 = vmatprep.subr.mxu0 %v119
  %298 = vmatpush1.msra.mxu0 %v118
  %299 = vmatprep.subr.mxu0 %v123
  %300 = vmatpush1.msra.mxu0 %v122
  %301 = vmatprep.subr.mxu0 %v127
  %302 = vmatpush1.msra.mxu0 %v126
  %303 = vmatprep.subr.mxu0 %v131
  %304 = vmatpush1.msra.mxu0 %v130
  %305 = vmatprep.subr.mxu0 %v135
  %306 = vmatpush1.msra.mxu0 %v134
  %307 = vmatprep.subr.mxu0 %v139
  %308 = vmatpush1.msra.mxu0 %v138
  %309 = vmatprep.mubr.f32.mxu0 %v171
  %310 = vmatmul.mubr.f32.gmra.mrb[0].mxu0 %v170
  %v311 = vpop.f32.mrb[0].mxu0
  %v312 = vadd.f32 %v154, %v311
  %v313 = vpop.f32.mrb[0].mxu0
  %v314 = vadd.f32 %v158, %v313
  %315 = vdwg.mxu0
  %v316 = vmax.f32 %v241, %v312
  %v317 = vmax.f32 %v243, %v314
  %v318 = vmax.f32 %v316, %v317
  %320 = vrot.lane.b32.xlu0 %v318, 64
  %v321 = vpop.permute.xlu0 %320
  %v323 = vmax.f32 %v318, %v321
  %325 = vrot.lane.b32.xlu0 %v323, 96
  %v326 = vpop.permute.xlu0 %325
  %v328 = vmax.f32 %v323, %v326
  %v329 = vmax.f32 %v328, 0.0
  %v330 = vld [vmem:[%s1 + $0x420] sm:$0xff]
  %v331 = vld [vmem:[%s1 + $0x428] sm:$0xff]
  %v332 = vld [vmem:[%s1 + $0x440] sm:$0xff]
  %v333 = vld [vmem:[%s1 + $0x448] sm:$0xff]
  %v334 = vld [vmem:[%s1 + $0x460] sm:$0xff]
  %v335 = vld [vmem:[%s1 + $0x468] sm:$0xff]
  %v336 = vld [vmem:[%s1 + $0x480] sm:$0xff]
  %v337 = vld [vmem:[%s1 + $0x488] sm:$0xff]
  %s338 = scalar_lea.vmem %s1, 1184
  %v339 = vld [vmem:[%s338] ss:$8 sm:$0x3]
  %v341 = vlaneseq
  %v342 = vshrl.u32 %v341, 7
  %v343 = vsub.s32 0, %v342
  %v344 = vrot.slane %v339, %v343
  %v345 = vlaneseq
  %v346 = vshrl.u32 %v345, 7
  %v347 = vsub.s32 1, %v346
  %v348 = vrot.slane %v339, %v347
  %vm351 = vcmask 261120
  %v353 = vsel %vm351, %v329, 0
  %355 = vmatprep.subr.mxu0 %v331
  %356 = vmatpush1.msra.mxu0 %v330
  %357 = vmatprep.subr.mxu0 %v333
  %358 = vmatpush1.msra.mxu0 %v332
  %359 = vmatprep.subr.mxu0 %v335
  %360 = vmatpush1.msra.mxu0 %v334
  %361 = vmatprep.subr.mxu0 %v337
  %362 = vmatpush1.msra.mxu0 %v336
  %363 = vmatprep.subr.mxu0 0.0
  %364 = vmatpush1.msra.mxu0 0.0
  %365 = vmatprep.subr.mxu0 0.0
  %366 = vmatpush1.msra.mxu0 0.0
  %367 = vmatprep.subr.mxu0 0.0
  %368 = vmatpush1.msra.mxu0 0.0
  %369 = vmatprep.subr.mxu0 0.0
  %370 = vmatpush1.msra.mxu0 0.0
  %371 = vmatprep.subr.mxu0 0.0
  %372 = vmatpush1.msra.mxu0 0.0
  %373 = vmatprep.subr.mxu0 0.0
  %374 = vmatpush1.msra.mxu0 0.0
  %375 = vmatprep.subr.mxu0 0.0
  %376 = vmatpush1.msra.mxu0 0.0
  %377 = vmatprep.subr.mxu0 0.0
  %378 = vmatpush1.msra.mxu0 0.0
  %379 = vmatprep.subr.mxu0 0.0
  %380 = vmatpush1.msra.mxu0 0.0
  %381 = vmatprep.subr.mxu0 0.0
  %382 = vmatpush1.msra.mxu0 0.0
  %383 = vmatprep.subr.mxu0 0.0
  %384 = vmatpush1.msra.mxu0 0.0
  %385 = vmatprep.subr.mxu0 0.0
  %386 = vmatpush1.msra.mxu0 0.0
  %387 = vmatprep.subr.mxu0 0.0
  %388 = vmatpush1.msra.mxu0 0.0
  %389 = vmatprep.subr.mxu0 0.0
  %390 = vmatpush1.msra.mxu0 0.0
  %391 = vmatprep.subr.mxu0 0.0
  %392 = vmatpush1.msra.mxu0 0.0
  %393 = vmatprep.subr.mxu0 0.0
  %394 = vmatpush1.msra.mxu0 0.0
  %395 = vmatprep.subr.mxu0 0.0
  %396 = vmatpush1.msra.mxu0 0.0
  %397 = vmatprep.subr.mxu0 0.0
  %398 = vmatpush1.msra.mxu0 0.0
  %399 = vmatprep.subr.mxu0 0.0
  %400 = vmatpush1.msra.mxu0 0.0
  %401 = vmatprep.subr.mxu0 0.0
  %402 = vmatpush1.msra.mxu0 0.0
  %403 = vmatprep.subr.mxu0 0.0
  %404 = vmatpush1.msra.mxu0 0.0
  %405 = vmatprep.subr.mxu0 0.0
  %406 = vmatpush1.msra.mxu0 0.0
  %407 = vmatprep.subr.mxu0 0.0
  %408 = vmatpush1.msra.mxu0 0.0
  %409 = vmatprep.subr.mxu0 0.0
  %410 = vmatpush1.msra.mxu0 0.0
  %411 = vmatprep.subr.mxu0 0.0
  %412 = vmatpush1.msra.mxu0 0.0
  %413 = vmatprep.subr.mxu0 0.0
  %414 = vmatpush1.msra.mxu0 0.0
  %415 = vmatprep.subr.mxu0 0.0
  %416 = vmatpush1.msra.mxu0 0.0
  %417 = vmatprep.subr.mxu0 0.0
  %418 = vmatpush1.msra.mxu0 0.0
  %419 = vmatprep.mubr.f32.mxu0 0.0
  %420 = vmatmul.mubr.f32.gmra.mrb[0].mxu0 %v353
  %v421 = vpop.f32.mrb[0].mxu0
  %v422 = vadd.f32 %v344, %v421
  %v423 = vpop.f32.mrb[0].mxu0
  %v424 = vadd.f32 %v348, %v423
  %425 = vdwg.mxu0
  %v428 = vcombine.low %v422, %v424
  %v430 = vunpack.c.l.s4 1983009808
  %v431 = vunpack.c.0.s8 %v430
  %v432 = vlaneseq
  %v433 = vshrl.u32 %v432, 7
  %v434 = vsub.s32 %v431, %v433
  %v435 = vrot.slane %v428, %v434
  %437 = vst [vmem:[%s2] sm:$0xf] %v435
  // Predicated region
  $region10: #{cnn_forward.1} parent=0 // pred_check
    _
  $region11: #{cnn_forward.1} parent=0 // pred_check_branch
    %439 = sbr.rel (0) target = $region13
  $region12: #{cnn_forward.1} parent=0 // pred_region
    _
  $region13: #{cnn_forward.1} parent=0 // pred_fallthru
    _
  // Predicated region
  $region14: #{cnn_forward.1} parent=0 // pred_check
    _
  $region15: #{cnn_forward.1} parent=0 // pred_check_branch
    %441 = sbr.rel (0) target = $region17
  $region16: #{cnn_forward.1} parent=0 // pred_region
    _
  $region17: #{cnn_forward.1} parent=0 // pred_fallthru
    _

</llo_original>
